<compile_context>
chip_gen: v7x
topology: tpu7x:2x2x1
jax: 0.10.0
libtpu: 0.0.40
codegen_flags: <defaults>
</compile_context>

<pallas_src>
import functools

import jax
import jax.numpy as jnp
from jax.experimental import pallas as pl
from jax.experimental.pallas import tpu as pltpu

HID1 = 400          # fc1 output width (PyTorch module)
HID2 = 16           # fc2 output width (PyTorch module)
HID1_PAD = 512      # 400 padded to a lane multiple (MXU/lane friendly)
HID2_PAD = 128      # 16  padded to a lane multiple


# ----------------------------- kernel ---------------------------------------
def _make_actor_kernel(with_en):
    def kernel(x_ref, w1_ref, b1_ref, w2_ref, b2_ref, w3_ref, b3_ref, *out_refs):
        # fc1 + relu  (bf16 MXU operands, f32 accumulation, f32 bias)
        x = x_ref[...].astype(jnp.bfloat16)
        h1 = jnp.dot(x, w1_ref[...], preferred_element_type=jnp.float32)
        h1 = jnp.maximum(h1 + b1_ref[...], 0.0)
        # fc2 + relu  (this activation is `en_input` in the PyTorch module)
        h2 = jnp.dot(h1.astype(jnp.bfloat16), w2_ref[...],
                     preferred_element_type=jnp.float32)
        h2 = jnp.maximum(h2 + b2_ref[...], 0.0)
        if with_en:
            out_refs[1][...] = h2                       # lane-dense (TB, 128) store
        # fc3 + tanh
        h3 = jnp.dot(h2.astype(jnp.bfloat16), w3_ref[...],
                     preferred_element_type=jnp.float32)
        out_refs[0][...] = jnp.tanh(h3 + b3_ref[...])   # lane-dense (TB, A_PAD) store
    return kernel


# --------------------------- param handling ---------------------------------
def xavier_uniform(key, fan_in, fan_out):
    # matches nn.init.xavier_uniform_ (gain=1)
    bound = jnp.sqrt(6.0 / (fan_in + fan_out))
    return jax.random.uniform(key, (fan_in, fan_out), jnp.float32, -bound, bound)


def linear_bias(key, fan_in, fan_out):
    # PyTorch nn.Linear default bias init: U(-1/sqrt(fan_in), 1/sqrt(fan_in))
    bound = 1.0 / jnp.sqrt(float(fan_in))
    return jax.random.uniform(key, (1, fan_out), jnp.float32, -bound, bound)


def init_actor_params(key, state_dim, action_dim):
    """Raw (unpadded, f32) parameters, matching the PyTorch module's init scheme."""
    k1, k2, k3, k4, k5, k6 = jax.random.split(key, 6)
    w1 = xavier_uniform(k1, state_dim, HID1)
    b1 = linear_bias(k2, state_dim, HID1)
    w2 = xavier_uniform(k3, HID1, HID2)
    b2 = linear_bias(k4, HID1, HID2)
    w3 = jax.random.uniform(k5, (HID2, action_dim), jnp.float32, -0.003, 0.003)
    b3 = linear_bias(k6, HID2, action_dim)
    return (w1, b1, w2, b2, w3, b3)


def prepare_actor_params(params, action_dim):
    """Zero-pad widths to lane multiples and cast weights to bf16 (done once).

    ReLU(0)=0 and zero weight rows/cols contribute nothing, so the numerics of
    the valid region are unchanged (up to bf16 rounding of the weights).
    """
    w1, b1, w2, b2, w3, b3 = params
    a_pad = max(128, ((action_dim + 127) // 128) * 128)
    s = w1.shape[0]
    w1p = jnp.zeros((s, HID1_PAD), jnp.bfloat16).at[:, :HID1].set(w1.astype(jnp.bfloat16))
    b1p = jnp.zeros((1, HID1_PAD), jnp.float32).at[:, :HID1].set(b1)
    w2p = jnp.zeros((HID1_PAD, HID2_PAD), jnp.bfloat16).at[:HID1, :HID2].set(w2.astype(jnp.bfloat16))
    b2p = jnp.zeros((1, HID2_PAD), jnp.float32).at[:, :HID2].set(b2)
    w3p = jnp.zeros((HID2_PAD, a_pad), jnp.bfloat16).at[:HID2, :action_dim].set(w3.astype(jnp.bfloat16))
    b3p = jnp.zeros((1, a_pad), jnp.float32).at[:, :action_dim].set(b3)
    return (w1p, b1p, w2p, b2p, w3p, b3p)


# ------------------------------ wrapper --------------------------------------
@functools.partial(jax.jit, static_argnames=("action_dim", "en", "tb"))
def actor_forward(x, padded_params, action_dim, en=False, tb=256):
    """Full Actor forward pass in one fused Pallas kernel, blocked along batch."""
    w1, b1, w2, b2, w3, b3 = padded_params
    B, S = x.shape
    a_pad = w3.shape[1]

    # Batch tile: big enough to amortize per-step overhead; a full-array block
    # for small batches (block_shape == array dims is always legal wrt (8,128)).
    TB = B if B < tb else tb
    grid = (pl.cdiv(B, TB),)

    def const_spec(arr):
        # Weights/biases: one full-array block with a constant index_map ->
        # VMEM-resident, never re-DMA'd across grid steps.
        return pl.BlockSpec(arr.shape, lambda i: (0, 0))

    x_spec = pl.BlockSpec((TB, S), lambda i: (i, 0))
    out_spec = pl.BlockSpec((TB, a_pad), lambda i: (i, 0))
    out_shape = jax.ShapeDtypeStruct((B, a_pad), jnp.float32)
    if en:
        out_shape = (out_shape, jax.ShapeDtypeStruct((B, HID2_PAD), jnp.float32))
        out_specs = (out_spec, pl.BlockSpec((TB, HID2_PAD), lambda i: (i, 0)))
    else:
        out_specs = out_spec

    res = pl.pallas_call(
        _make_actor_kernel(en),
        out_shape=out_shape,
        grid=grid,
        in_specs=[x_spec, const_spec(w1), const_spec(b1), const_spec(w2),
                  const_spec(b2), const_spec(w3), const_spec(b3)],
        out_specs=out_specs,
        compiler_params=pltpu.CompilerParams(
            dimension_semantics=("parallel",)),   # megacore-shard batch on v7x
    )(x, w1, b1, w2, b2, w3, b3)

    if en:
        out_pad, en_pad = res
        return out_pad[:, :action_dim], en_pad[:, :HID2]
    return res[:, :action_dim]


# ----------------------------- reference -------------------------------------
def actor_reference(x, params):
    """Pure-JAX reference mimicking the kernel's bf16 MXU inputs / f32 accumulation."""
    w1, b1, w2, b2, w3, b3 = params
    bf = lambda a: a.astype(jnp.bfloat16).astype(jnp.float32)
    h1 = jnp.maximum(bf(x) @ bf(w1) + b1, 0.0)
    h2 = jnp.maximum(bf(h1) @ bf(w2) + b2, 0.0)
    out = jnp.tanh(bf(h2) @ bf(w3) + b3)
    return out, h2


# -------------------------------- main ---------------------------------------
if __name__ == "__main__":
    state_dim, action_dim, batch = 32, 8, 2
    # `limit` exists in the PyTorch module's __init__ but is unused in forward().
    limit = jnp.ones((action_dim,), jnp.float32)

    key = jax.random.PRNGKey(0)
    pkey, xkey, xkey_big = jax.random.split(key, 3)
    raw_params = init_actor_params(pkey, state_dim, action_dim)
    padded_params = prepare_actor_params(raw_params, action_dim)

    # --- small batch (matches the module's typical single-transition call) ---
    x = jax.random.normal(xkey, (batch, state_dim), jnp.float32)
    out, en_input = actor_forward(x, padded_params, action_dim, en=True)
    out = jax.block_until_ready(out)
    en_input = jax.block_until_ready(en_input)

    ref_out, ref_en = actor_reference(x, raw_params)
    assert out.shape == (batch, action_dim)
    assert en_input.shape == (batch, HID2)
    assert jnp.allclose(out, ref_out, atol=5e-3, rtol=5e-3)
    assert jnp.allclose(en_input, ref_en, atol=5e-3, rtol=5e-3)

    # en=False path: single output, no en writeback
    out_only = jax.block_until_ready(actor_forward(x, padded_params, action_dim, en=False))
    assert out_only.shape == (batch, action_dim)
    assert jnp.allclose(out_only, ref_out, atol=5e-3, rtol=5e-3)

    # --- larger batch: exercises the multi-tile batch grid (grid=(2,), TB=256) ---
    xb = jax.random.normal(xkey_big, (512, state_dim), jnp.float32)
    out_b = jax.block_until_ready(actor_forward(xb, padded_params, action_dim, en=False))
    ref_b, _ = actor_reference(xb, raw_params)
    assert out_b.shape == (512, action_dim)
    assert jnp.allclose(out_b, ref_b, atol=5e-3, rtol=5e-3)

    print("KERNEL_OK")
</pallas_src>

<mosaic_0001>
module attributes {stable_mosaic.version = 11 : i64} {
  func.func @kernel(%arg0: i32, %arg1: memref<2x32xf32, #tpu.memory_space<vmem>>, %arg2: memref<32x512xbf16, #tpu.memory_space<vmem>>, %arg3: memref<1x512xf32, #tpu.memory_space<vmem>>, %arg4: memref<512x128xbf16, #tpu.memory_space<vmem>>, %arg5: memref<1x128xf32, #tpu.memory_space<vmem>>, %arg6: memref<128x128xbf16, #tpu.memory_space<vmem>>, %arg7: memref<1x128xf32, #tpu.memory_space<vmem>>, %arg8: memref<2x128xf32, #tpu.memory_space<vmem>>, %arg9: memref<2x128xf32, #tpu.memory_space<vmem>>) attributes {dimension_semantics = [#tpu.dimension_semantics<parallel>], iteration_bounds = array<i64: 1>, scalar_prefetch = 0 : i64, scratch_operands = 0 : i64, tpu.core_type = #tpu.core_type<tc>, window_params = [{transform_indices = @transform_0, window_bounds = array<i64: 2, 32>}, {pipeline_mode = #tpu.pipeline_mode<synchronous>, transform_indices = @transform_1, window_bounds = array<i64: 32, 512>}, {pipeline_mode = #tpu.pipeline_mode<synchronous>, transform_indices = @transform_2, window_bounds = array<i64: 1, 512>}, {pipeline_mode = #tpu.pipeline_mode<synchronous>, transform_indices = @transform_3, window_bounds = array<i64: 512, 128>}, {pipeline_mode = #tpu.pipeline_mode<synchronous>, transform_indices = @transform_4, window_bounds = array<i64: 1, 128>}, {pipeline_mode = #tpu.pipeline_mode<synchronous>, transform_indices = @transform_5, window_bounds = array<i64: 128, 128>}, {pipeline_mode = #tpu.pipeline_mode<synchronous>, transform_indices = @transform_6, window_bounds = array<i64: 1, 128>}, {transform_indices = @transform_7, window_bounds = array<i64: 2, 128>}, {transform_indices = @transform_8, window_bounds = array<i64: 2, 128>}]} {
    %c0 = arith.constant 0 : index
    %c0_0 = arith.constant 0 : index
    %0 = vector.load %arg1[%c0, %c0_0] : memref<2x32xf32, #tpu.memory_space<vmem>>, vector<2x32xf32>
    %1 = arith.truncf %0 : vector<2x32xf32> to vector<2x32xbf16>
    %c0_1 = arith.constant 0 : index
    %c0_2 = arith.constant 0 : index
    %2 = vector.load %arg2[%c0_1, %c0_2] : memref<32x512xbf16, #tpu.memory_space<vmem>>, vector<32x512xbf16>
    %cst = arith.constant dense<0.000000e+00> : vector<2x512xf32>
    %3 = tpu.matmul %1, %2, %cst {dimension_numbers = #tpu.dot_dimension_numbers<[1], [0], [0], [1], [0, 0, 1, 1], [], []>} : vector<2x32xbf16>, vector<32x512xbf16>, vector<2x512xf32> -> vector<2x512xf32>
    %c0_3 = arith.constant 0 : index
    %c0_4 = arith.constant 0 : index
    %4 = vector.load %arg3[%c0_3, %c0_4] : memref<1x512xf32, #tpu.memory_space<vmem>>, vector<1x512xf32>
    %5 = vector.broadcast %4 : vector<1x512xf32> to vector<2x512xf32>
    %6 = arith.addf %3, %5 : vector<2x512xf32>
    %cst_5 = arith.constant 0.000000e+00 : f32
    %7 = vector.broadcast %cst_5 : f32 to vector<2x512xf32>
    %8 = arith.maximumf %6, %7 : vector<2x512xf32>
    %9 = arith.truncf %8 : vector<2x512xf32> to vector<2x512xbf16>
    %c0_6 = arith.constant 0 : index
    %c0_7 = arith.constant 0 : index
    %10 = vector.load %arg4[%c0_6, %c0_7] : memref<512x128xbf16, #tpu.memory_space<vmem>>, vector<512x128xbf16>
    %cst_8 = arith.constant dense<0.000000e+00> : vector<2x128xf32>
    %11 = tpu.matmul %9, %10, %cst_8 {dimension_numbers = #tpu.dot_dimension_numbers<[1], [0], [0], [1], [0, 0, 1, 1], [], []>} : vector<2x512xbf16>, vector<512x128xbf16>, vector<2x128xf32> -> vector<2x128xf32>
    %c0_9 = arith.constant 0 : index
    %c0_10 = arith.constant 0 : index
    %12 = vector.load %arg5[%c0_9, %c0_10] : memref<1x128xf32, #tpu.memory_space<vmem>>, vector<1x128xf32>
    %13 = vector.broadcast %12 : vector<1x128xf32> to vector<2x128xf32>
    %14 = arith.addf %11, %13 : vector<2x128xf32>
    %cst_11 = arith.constant 0.000000e+00 : f32
    %15 = vector.broadcast %cst_11 : f32 to vector<2x128xf32>
    %16 = arith.maximumf %14, %15 : vector<2x128xf32>
    %c0_12 = arith.constant 0 : index
    %c0_13 = arith.constant 0 : index
    %17 = vector.load %arg9[%c0_12, %c0_13] : memref<2x128xf32, #tpu.memory_space<vmem>>, vector<2x128xf32>
    tpu.vector_store %arg9[%c0_12, %c0_13], %16 {strides = array<i32>} : memref<2x128xf32, #tpu.memory_space<vmem>>, vector<2x128xf32>,
    %18 = arith.truncf %16 : vector<2x128xf32> to vector<2x128xbf16>
    %c0_14 = arith.constant 0 : index
    %c0_15 = arith.constant 0 : index
    %19 = vector.load %arg6[%c0_14, %c0_15] : memref<128x128xbf16, #tpu.memory_space<vmem>>, vector<128x128xbf16>
    %cst_16 = arith.constant dense<0.000000e+00> : vector<2x128xf32>
    %20 = tpu.matmul %18, %19, %cst_16 {dimension_numbers = #tpu.dot_dimension_numbers<[1], [0], [0], [1], [0, 0, 1, 1], [], []>} : vector<2x128xbf16>, vector<128x128xbf16>, vector<2x128xf32> -> vector<2x128xf32>
    %c0_17 = arith.constant 0 : index
    %c0_18 = arith.constant 0 : index
    %21 = vector.load %arg7[%c0_17, %c0_18] : memref<1x128xf32, #tpu.memory_space<vmem>>, vector<1x128xf32>
    %22 = vector.broadcast %21 : vector<1x128xf32> to vector<2x128xf32>
    %23 = arith.addf %20, %22 : vector<2x128xf32>
    %24 = math.tanh %23 : vector<2x128xf32>
    %c0_19 = arith.constant 0 : index
    %c0_20 = arith.constant 0 : index
    %25 = vector.load %arg8[%c0_19, %c0_20] : memref<2x128xf32, #tpu.memory_space<vmem>>, vector<2x128xf32>
    tpu.vector_store %arg8[%c0_19, %c0_20], %24 {strides = array<i32>} : memref<2x128xf32, #tpu.memory_space<vmem>>, vector<2x128xf32>,
    return
  }
  func.func @transform_0(%arg0: i32) -> (i32, i32) {
    %c0_i32 = arith.constant 0 : i32
    %c0_i32_0 = arith.constant 0 : i32
    return %arg0, %c0_i32 : i32, i32
  }
  func.func @transform_1(%arg0: i32) -> (i32, i32) {
    %c0_i32 = arith.constant 0 : i32
    %c0_i32_0 = arith.constant 0 : i32
    %c0_i32_1 = arith.constant 0 : i32
    return %c0_i32, %c0_i32_0 : i32, i32
  }
  func.func @transform_2(%arg0: i32) -> (i32, i32) {
    %c0_i32 = arith.constant 0 : i32
    %c0_i32_0 = arith.constant 0 : i32
    %c0_i32_1 = arith.constant 0 : i32
    return %c0_i32, %c0_i32_0 : i32, i32
  }
  func.func @transform_3(%arg0: i32) -> (i32, i32) {
    %c0_i32 = arith.constant 0 : i32
    %c0_i32_0 = arith.constant 0 : i32
    %c0_i32_1 = arith.constant 0 : i32
    return %c0_i32, %c0_i32_0 : i32, i32
  }
  func.func @transform_4(%arg0: i32) -> (i32, i32) {
    %c0_i32 = arith.constant 0 : i32
    %c0_i32_0 = arith.constant 0 : i32
    %c0_i32_1 = arith.constant 0 : i32
    return %c0_i32, %c0_i32_0 : i32, i32
  }
  func.func @transform_5(%arg0: i32) -> (i32, i32) {
    %c0_i32 = arith.constant 0 : i32
    %c0_i32_0 = arith.constant 0 : i32
    %c0_i32_1 = arith.constant 0 : i32
    return %c0_i32, %c0_i32_0 : i32, i32
  }
  func.func @transform_6(%arg0: i32) -> (i32, i32) {
    %c0_i32 = arith.constant 0 : i32
    %c0_i32_0 = arith.constant 0 : i32
    %c0_i32_1 = arith.constant 0 : i32
    return %c0_i32, %c0_i32_0 : i32, i32
  }
  func.func @transform_7(%arg0: i32) -> (i32, i32) {
    %c0_i32 = arith.constant 0 : i32
    %c0_i32_0 = arith.constant 0 : i32
    return %arg0, %c0_i32 : i32, i32
  }
  func.func @transform_8(%arg0: i32) -> (i32, i32) {
    %c0_i32 = arith.constant 0 : i32
    %c0_i32_0 = arith.constant 0 : i32
    return %arg0, %c0_i32 : i32, i32
  }
}

</mosaic_0001>

<llo_original>
// kernel: actor_forward.1
$region0: #{actor_forward.1}
  #allocation0 [shape = 'u32[]', space=smem, size = 0x4, offset = 0x4, fixed_abs, tag = 'smem constant byte address 0x4 - core index']
  #allocation1 [shape = 'u32[144,128]{1,0:T(1,128)}', space=vmem, size = 0x12000, scoped, tag = 'internal scratch']
  %s0 = inlined_call_operand.hbm [shape: f32[2,32], index: 0, kind: input, shape index: {}]
  %s1 = inlined_call_operand.hbm [shape: bf16[32,512], index: 1, kind: input, shape index: {}]
  %s2 = inlined_call_operand.vmem [shape: f32[1,512], index: 2, kind: input, shape index: {}]
  %s3 = inlined_call_operand.hbm [shape: bf16[512,128], index: 3, kind: input, shape index: {}]
  %s4 = inlined_call_operand.vmem [shape: f32[1,128], index: 4, kind: input, shape index: {}]
  %s5 = inlined_call_operand.hbm [shape: bf16[128,128], index: 5, kind: input, shape index: {}]
  %s6 = inlined_call_operand.vmem [shape: f32[1,128], index: 6, kind: input, shape index: {}]
  %s7 = inlined_call_operand.hbm [shape: f32[2,128], index: 7, kind: output, shape index: {0}]
  %s8 = inlined_call_operand.hbm [shape: f32[2,128], index: 8, kind: output, shape index: {1}]
  %9 = xla_tuple %s7, %s8
  %s10 = sld [smem:[#allocation0]]
  $region62: #{actor_forward.1} parent=0
    _
  %s12 = ssub.s32 1, %s10
  %s13 = scalar_select 0, %s12, %s10
  $region1: #{actor_forward.1} parent=0
    #allocation2 [shape = 'u8[1024]{0}', space=vmem, size = 0x400, scoped, tag = 'input window, operand 0, single buffered']
    #allocation3 [shape = 's32[1]{0}', space=sflag, size = 0x4, scoped, tag = 'scoped memory for actor_forward.1']
    #allocation4 [shape = 's32[1]{0}', space=sflag, size = 0x4, scoped, tag = 'scoped memory for actor_forward.1']
    #allocation5 [shape = 'u8[32768]{0}', space=vmem, size = 0x8000, scoped, tag = 'input window, operand 1, single buffered']
    #allocation6 [shape = 's32[1]{0}', space=sflag, size = 0x4, scoped, tag = 'scoped memory for actor_forward.1']
    #allocation7 [shape = 'u8[131072]{0}', space=vmem, size = 0x20000, scoped, tag = 'input window, operand 3, single buffered']
    #allocation8 [shape = 'u8[32768]{0}', space=vmem, size = 0x8000, scoped, tag = 'input window, operand 5, single buffered']
    #allocation9 [shape = 's32[1]{0}', space=sflag, size = 0x4, scoped, tag = 'scoped memory for actor_forward.1']
    #allocation10 [shape = 'u8[1024]{0}', space=vmem, size = 0x400, scoped, tag = 'output window, operand 0, single buffered']
    #allocation11 [shape = 'u8[1024]{0}', space=vmem, size = 0x400, scoped, tag = 'output window, operand 1, single buffered']
    #allocation12 [shape = 's32[1]{0}', space=sflag, size = 0x4, scoped, tag = 'scoped memory for actor_forward.1']
    %14 = vsyncpa [#allocation3], 0
    %15 = vsyncpa [#allocation6], 0
    %16 = vsyncpa [#allocation9], 0
    %17 = vsyncpa [#allocation4], 0
    %18 = vsyncpa [#allocation12], 0
    // Predicated region
    $region2: #{actor_forward.1} parent=1 // pred_check
      _
    $region3: #{actor_forward.1} parent=1 // pred_check_branch
      %20 = sbr.rel (0) target = $region5
    $region4: #{actor_forward.1} parent=1 // pred_region
      %s22 = ssub.s32 32, 32
      %23 = vsyncadd [#allocation3], %s22
      %s25 = sshll.u32 [#allocation2], 4
      %s26 = int_to_ptr.vmem [resolvable:$true] %s25
      %28 = dma.hbm_to_vmem [thread:$0]  %s0, 32, %s26, [#allocation3]
    $region5: #{actor_forward.1} parent=1 // pred_fallthru
      _
    // Predicated region
    $region6: #{actor_forward.1} parent=1 // pred_check
      _
    $region7: #{actor_forward.1} parent=1 // pred_check_branch
      %30 = sbr.rel (0) target = $region9
    $region8: #{actor_forward.1} parent=1 // pred_region
      %s32 = ssub.s32 1024, 1024
      %33 = vsyncadd [#allocation6], %s32
      %s34 = sshll.u32 [#allocation5], 4
      %s35 = int_to_ptr.vmem [resolvable:$true] %s34
      %40 = dma.hbm_to_vmem [thread:$0]  %s1, 1024, %s35, [#allocation6], 256, 256, 16
    $region9: #{actor_forward.1} parent=1 // pred_fallthru
      _
    // Predicated region
    $region10: #{actor_forward.1} parent=1 // pred_check
      _
    $region11: #{actor_forward.1} parent=1 // pred_check_branch
      %42 = sbr.rel (0) target = $region13
    $region12: #{actor_forward.1} parent=1 // pred_region
      _
    $region13: #{actor_forward.1} parent=1 // pred_fallthru
      _
    // Predicated region
    $region14: #{actor_forward.1} parent=1 // pred_check
      _
    $region15: #{actor_forward.1} parent=1 // pred_check_branch
      %44 = sbr.rel (0) target = $region17
    $region16: #{actor_forward.1} parent=1 // pred_region
      %s46 = ssub.s32 4096, 4096
      %47 = vsyncadd [#allocation6], %s46
      %s48 = sshll.u32 [#allocation7], 4
      %s49 = int_to_ptr.vmem [resolvable:$true] %s48
      %54 = dma.hbm_to_vmem [thread:$0]  %s3, 4096, %s49, [#allocation6], 64, 64, 4
    $region17: #{actor_forward.1} parent=1 // pred_fallthru
      _
    // Predicated region
    $region18: #{actor_forward.1} parent=1 // pred_check
      _
    $region19: #{actor_forward.1} parent=1 // pred_check_branch
      %56 = sbr.rel (0) target = $region21
    $region20: #{actor_forward.1} parent=1 // pred_region
      _
    $region21: #{actor_forward.1} parent=1 // pred_fallthru
      _
    // Predicated region
    $region22: #{actor_forward.1} parent=1 // pred_check
      _
    $region23: #{actor_forward.1} parent=1 // pred_check_branch
      %58 = sbr.rel (0) target = $region25
    $region24: #{actor_forward.1} parent=1 // pred_region
      %s60 = ssub.s32 1024, 1024
      %61 = vsyncadd [#allocation9], %s60
      %s62 = sshll.u32 [#allocation8], 4
      %s63 = int_to_ptr.vmem [resolvable:$true] %s62
      %68 = dma.hbm_to_vmem [thread:$0]  %s5, 1024, %s63, [#allocation9], 64, 64, 4
    $region25: #{actor_forward.1} parent=1 // pred_fallthru
      _
    // Predicated region
    $region26: #{actor_forward.1} parent=1 // pred_check
      _
    $region27: #{actor_forward.1} parent=1 // pred_check_branch
      %70 = sbr.rel (0) target = $region29
    $region28: #{actor_forward.1} parent=1 // pred_region
      _
    $region29: #{actor_forward.1} parent=1 // pred_fallthru
      _
    // Predicated region
    $region30: #{actor_forward.1} parent=1 // pred_check
      _
    $region31: #{actor_forward.1} parent=1 // pred_check_branch
      %72 = sbr.rel (0) target = $region33
    $region32: #{actor_forward.1} parent=1 // pred_region
      %73 = dma.done [#allocation3], 32
    $region33: #{actor_forward.1} parent=1 // pred_fallthru
      _
    // Predicated region
    $region34: #{actor_forward.1} parent=1 // pred_check
      _
    $region35: #{actor_forward.1} parent=1 // pred_check_branch
      %75 = sbr.rel (0) target = $region37
    $region36: #{actor_forward.1} parent=1 // pred_region
      %76 = dma.done [#allocation6], 1024
    $region37: #{actor_forward.1} parent=1 // pred_fallthru
      _
    // Predicated region
    $region38: #{actor_forward.1} parent=1 // pred_check
      _
    $region39: #{actor_forward.1} parent=1 // pred_check_branch
      %78 = sbr.rel (0) target = $region41
    $region40: #{actor_forward.1} parent=1 // pred_region
      %79 = dma.done [#allocation6], 4096
    $region41: #{actor_forward.1} parent=1 // pred_fallthru
      _
    // Predicated region
    $region42: #{actor_forward.1} parent=1 // pred_check
      _
    $region43: #{actor_forward.1} parent=1 // pred_check_branch
      %81 = sbr.rel (0) target = $region45
    $region44: #{actor_forward.1} parent=1 // pred_region
      %82 = dma.done [#allocation9], 1024
    $region45: #{actor_forward.1} parent=1 // pred_fallthru
      _
    %v84 = vld [vmem:[#allocation2] sm:$0x3]
    %v85 = vpack.c.bf16 %v84, %v84
    %v86 = vld [vmem:[#allocation5] sm:$0xff]
    %v87 = vld [vmem:[#allocation5 + $0x8] sm:$0xff]
    %v88 = vld [vmem:[#allocation5 + $0x10] sm:$0xff]
    %v89 = vld [vmem:[#allocation5 + $0x18] sm:$0xff]
    %v90 = vld [vmem:[#allocation5 + $0x20] sm:$0xff]
    %v91 = vld [vmem:[#allocation5 + $0x28] sm:$0xff]
    %v92 = vld [vmem:[#allocation5 + $0x30] sm:$0xff]
    %v93 = vld [vmem:[#allocation5 + $0x38] sm:$0xff]
    %v94 = vld [vmem:[%s2] sm:$0xf]
    %v96 = vlaneseq
    %v97 = vshrl.u32 %v96, 7
    %v98 = vsub.s32 0, %v97
    %v99 = vrot.slane %v94, %v98
    %v100 = vlaneseq
    %v101 = vshrl.u32 %v100, 7
    %v102 = vsub.s32 1, %v101
    %v103 = vrot.slane %v94, %v102
    %v104 = vlaneseq
    %v105 = vshrl.u32 %v104, 7
    %v106 = vsub.s32 2, %v105
    %v107 = vrot.slane %v94, %v106
    %v108 = vlaneseq
    %v109 = vshrl.u32 %v108, 7
    %v110 = vsub.s32 3, %v109
    %v111 = vrot.slane %v94, %v110
    %v124 = vunpack.c.l.b16 %v86
    %v125 = vunpack.c.h.b16 %v86
    %v126 = vunpack.c.l.b16 %v87
    %v127 = vunpack.c.h.b16 %v87
    %v128 = vunpack.c.l.b16 %v88
    %v129 = vunpack.c.h.b16 %v88
    %v130 = vunpack.c.l.b16 %v89
    %v131 = vunpack.c.h.b16 %v89
    %v132 = vunpack.c.l.b16 %v90
    %v133 = vunpack.c.h.b16 %v90
    %v134 = vunpack.c.l.b16 %v91
    %v135 = vunpack.c.h.b16 %v91
    %v136 = vunpack.c.l.b16 %v92
    %v137 = vunpack.c.h.b16 %v92
    %v138 = vunpack.c.l.b16 %v93
    %v139 = vunpack.c.h.b16 %v93
    %v140 = vpack.c.b16 %v128, %v124
    %v141 = vpack.c.b16 %v129, %v125
    %v142 = vpack.c.b16 %v130, %v126
    %v143 = vpack.c.b16 %v131, %v127
    %v144 = vpack.c.b16 %v136, %v132
    %v145 = vpack.c.b16 %v137, %v133
    %v146 = vpack.c.b16 %v138, %v134
    %v147 = vpack.c.b16 %v139, %v135
    %vm156 = vcmask 261120
    %v158 = vsel %vm156, %v85, 0
    %160 = vmatprep.subr.bf16.mxu0 %v141
    %161 = vmatpush1.bf16.msra.mxu0 %v140
    %162 = vmatprep.subr.bf16.mxu0 %v145
    %163 = vmatpush1.bf16.msra.mxu0 %v144
    %164 = vmatprep.subr.bf16.mxu0 0
    %165 = vmatpush1.bf16.msra.mxu0 0
    %166 = vmatprep.subr.bf16.mxu0 0
    %167 = vmatpush1.bf16.msra.mxu0 0
    %168 = vmatprep.subr.bf16.mxu0 0
    %169 = vmatpush1.bf16.msra.mxu0 0
    %170 = vmatprep.subr.bf16.mxu0 0
    %171 = vmatpush1.bf16.msra.mxu0 0
    %172 = vmatprep.subr.bf16.mxu0 0
    %173 = vmatpush1.bf16.msra.mxu0 0
    %174 = vmatprep.subr.bf16.mxu0 0
    %175 = vmatpush1.bf16.msra.mxu0 0
    %176 = vmatprep.subr.bf16.mxu0 0
    %177 = vmatpush1.bf16.msra.mxu0 0
    %178 = vmatprep.subr.bf16.mxu0 0
    %179 = vmatpush1.bf16.msra.mxu0 0
    %180 = vmatprep.subr.bf16.mxu0 0
    %181 = vmatpush1.bf16.msra.mxu0 0
    %182 = vmatprep.subr.bf16.mxu0 0
    %183 = vmatpush1.bf16.msra.mxu0 0
    %184 = vmatprep.subr.bf16.mxu0 0
    %185 = vmatpush1.bf16.msra.mxu0 0
    %186 = vmatprep.subr.bf16.mxu0 0
    %187 = vmatpush1.bf16.msra.mxu0 0
    %188 = vmatprep.subr.bf16.mxu0 0
    %189 = vmatpush1.bf16.msra.mxu0 0
    %190 = vmatprep.subr.bf16.mxu0 0
    %191 = vmatpush1.bf16.msra.mxu0 0
    %192 = vmatprep.mubr.bf16.mxu0 0
    %193 = vmatmul.mubr.bf16.gmra.mrb[0].mxu0 %v158
    %v194 = vpop.f32.mrb[0].mxu0
    %v195 = vadd.f32 %v99, %v194
    %v196 = vpop.f32.mrb[0].mxu0
    %v197 = vadd.f32 %v103, %v196
    %v198 = vpop.f32.mrb[0].mxu0
    %v199 = vpop.f32.mrb[0].mxu0
    %200 = vdwg.mxu0
    %201 = vmatprep.subr.bf16.mxu0 %v143
    %202 = vmatpush1.bf16.msra.mxu0 %v142
    %203 = vmatprep.subr.bf16.mxu0 %v147
    %204 = vmatpush1.bf16.msra.mxu0 %v146
    %205 = vmatprep.subr.bf16.mxu0 0
    %206 = vmatpush1.bf16.msra.mxu0 0
    %207 = vmatprep.subr.bf16.mxu0 0
    %208 = vmatpush1.bf16.msra.mxu0 0
    %209 = vmatprep.subr.bf16.mxu0 0
    %210 = vmatpush1.bf16.msra.mxu0 0
    %211 = vmatprep.subr.bf16.mxu0 0
    %212 = vmatpush1.bf16.msra.mxu0 0
    %213 = vmatprep.subr.bf16.mxu0 0
    %214 = vmatpush1.bf16.msra.mxu0 0
    %215 = vmatprep.subr.bf16.mxu0 0
    %216 = vmatpush1.bf16.msra.mxu0 0
    %217 = vmatprep.subr.bf16.mxu0 0
    %218 = vmatpush1.bf16.msra.mxu0 0
    %219 = vmatprep.subr.bf16.mxu0 0
    %220 = vmatpush1.bf16.msra.mxu0 0
    %221 = vmatprep.subr.bf16.mxu0 0
    %222 = vmatpush1.bf16.msra.mxu0 0
    %223 = vmatprep.subr.bf16.mxu0 0
    %224 = vmatpush1.bf16.msra.mxu0 0
    %225 = vmatprep.subr.bf16.mxu0 0
    %226 = vmatpush1.bf16.msra.mxu0 0
    %227 = vmatprep.subr.bf16.mxu0 0
    %228 = vmatpush1.bf16.msra.mxu0 0
    %229 = vmatprep.subr.bf16.mxu0 0
    %230 = vmatpush1.bf16.msra.mxu0 0
    %231 = vmatprep.subr.bf16.mxu0 0
    %232 = vmatpush1.bf16.msra.mxu0 0
    %233 = vmatprep.mubr.bf16.mxu0 0
    %234 = vmatmul.mubr.bf16.gmra.mrb[0].mxu0 %v158
    %v235 = vpop.f32.mrb[0].mxu0
    %v236 = vadd.f32 %v107, %v235
    %v237 = vpop.f32.mrb[0].mxu0
    %v238 = vadd.f32 %v111, %v237
    %v239 = vpop.f32.mrb[0].mxu0
    %v240 = vpop.f32.mrb[0].mxu0
    %241 = vdwg.mxu0
    %v242 = vmax.f32 %v195, 0.0
    %v243 = vmax.f32 %v197, 0.0
    %v244 = vmax.f32 %v236, 0.0
    %v245 = vmax.f32 %v238, 0.0
    %v246 = vpack.c.bf16 %v242, %v242
    %v247 = vpack.c.bf16 %v243, %v243
    %v248 = vpack.c.bf16 %v244, %v244
    %v249 = vpack.c.bf16 %v245, %v245
    %v250 = vld [vmem:[#allocation7] sm:$0xf]
    %v251 = vld [vmem:[#allocation7 + $0x4] sm:$0xf]
    %v252 = vld [vmem:[#allocation7 + $0x8] sm:$0xf]
    %v253 = vld [vmem:[#allocation7 + $0xc] sm:$0xf]
    %v254 = vld [vmem:[#allocation7 + $0x10] sm:$0xf]
    %v255 = vld [vmem:[#allocation7 + $0x14] sm:$0xf]
    %v256 = vld [vmem:[#allocation7 + $0x18] sm:$0xf]
    %v257 = vld [vmem:[#allocation7 + $0x1c] sm:$0xf]
    %v258 = vld [vmem:[#allocation7 + $0x20] sm:$0xf]
    %v259 = vld [vmem:[#allocation7 + $0x24] sm:$0xf]
    %v260 = vld [vmem:[#allocation7 + $0x28] sm:$0xf]
    %v261 = vld [vmem:[#allocation7 + $0x2c] sm:$0xf]
    %v262 = vld [vmem:[#allocation7 + $0x30] sm:$0xf]
    %v263 = vld [vmem:[#allocation7 + $0x34] sm:$0xf]
    %v264 = vld [vmem:[#allocation7 + $0x38] sm:$0xf]
    %v265 = vld [vmem:[#allocation7 + $0x3c] sm:$0xf]
    %v266 = vld [vmem:[#allocation7 + $0x40] sm:$0xf]
    %v267 = vld [vmem:[#allocation7 + $0x44] sm:$0xf]
    %v268 = vld [vmem:[#allocation7 + $0x48] sm:$0xf]
    %v269 = vld [vmem:[#allocation7 + $0x4c] sm:$0xf]
    %v270 = vld [vmem:[#allocation7 + $0x50] sm:$0xf]
    %v271 = vld [vmem:[#allocation7 + $0x54] sm:$0xf]
    %v272 = vld [vmem:[#allocation7 + $0x58] sm:$0xf]
    %v273 = vld [vmem:[#allocation7 + $0x5c] sm:$0xf]
    %v274 = vld [vmem:[#allocation7 + $0x60] sm:$0xf]
    %v275 = vld [vmem:[#allocation7 + $0x64] sm:$0xf]
    %v276 = vld [vmem:[#allocation7 + $0x68] sm:$0xf]
    %v277 = vld [vmem:[#allocation7 + $0x6c] sm:$0xf]
    %v278 = vld [vmem:[#allocation7 + $0x70] sm:$0xf]
    %v279 = vld [vmem:[#allocation7 + $0x74] sm:$0xf]
    %v280 = vld [vmem:[#allocation7 + $0x78] sm:$0xf]
    %v281 = vld [vmem:[#allocation7 + $0x7c] sm:$0xf]
    %v282 = vld [vmem:[#allocation7 + $0x80] sm:$0xf]
    %v283 = vld [vmem:[#allocation7 + $0x84] sm:$0xf]
    %v284 = vld [vmem:[#allocation7 + $0x88] sm:$0xf]
    %v285 = vld [vmem:[#allocation7 + $0x8c] sm:$0xf]
    %v286 = vld [vmem:[#allocation7 + $0x90] sm:$0xf]
    %v287 = vld [vmem:[#allocation7 + $0x94] sm:$0xf]
    %v288 = vld [vmem:[#allocation7 + $0x98] sm:$0xf]
    %v289 = vld [vmem:[#allocation7 + $0x9c] sm:$0xf]
    %v290 = vld [vmem:[#allocation7 + $0xa0] sm:$0xf]
    %v291 = vld [vmem:[#allocation7 + $0xa4] sm:$0xf]
    %v292 = vld [vmem:[#allocation7 + $0xa8] sm:$0xf]
    %v293 = vld [vmem:[#allocation7 + $0xac] sm:$0xf]
    %v294 = vld [vmem:[#allocation7 + $0xb0] sm:$0xf]
    %v295 = vld [vmem:[#allocation7 + $0xb4] sm:$0xf]
    %v296 = vld [vmem:[#allocation7 + $0xb8] sm:$0xf]
    %v297 = vld [vmem:[#allocation7 + $0xbc] sm:$0xf]
    %v298 = vld [vmem:[#allocation7 + $0xc0] sm:$0xf]
    %v299 = vld [vmem:[#allocation7 + $0xc4] sm:$0xf]
    %v300 = vld [vmem:[#allocation7 + $0xc8] sm:$0xf]
    %v301 = vld [vmem:[#allocation7 + $0xcc] sm:$0xf]
    %v302 = vld [vmem:[#allocation7 + $0xd0] sm:$0xf]
    %v303 = vld [vmem:[#allocation7 + $0xd4] sm:$0xf]
    %v304 = vld [vmem:[#allocation7 + $0xd8] sm:$0xf]
    %v305 = vld [vmem:[#allocation7 + $0xdc] sm:$0xf]
    %v306 = vld [vmem:[#allocation7 + $0xe0] sm:$0xf]
    %v307 = vld [vmem:[#allocation7 + $0xe4] sm:$0xf]
    %v308 = vld [vmem:[#allocation7 + $0xe8] sm:$0xf]
    %v309 = vld [vmem:[#allocation7 + $0xec] sm:$0xf]
    %v310 = vld [vmem:[#allocation7 + $0xf0] sm:$0xf]
    %v311 = vld [vmem:[#allocation7 + $0xf4] sm:$0xf]
    %v312 = vld [vmem:[#allocation7 + $0xf8] sm:$0xf]
    %v313 = vld [vmem:[#allocation7 + $0xfc] sm:$0xf]
    %v314 = vld [vmem:[%s4] sm:$0x1]
    %v316 = vlaneseq
    %v317 = vshrl.u32 %v316, 7
    %v318 = vsub.s32 0, %v317
    %v319 = vrot.slane %v314, %v318
    %v385 = vunpack.c.l.b16 %v250
    %v386 = vunpack.c.l.b16 %v251
    %v387 = vunpack.c.l.b16 %v252
    %v388 = vunpack.c.l.b16 %v253
    %v389 = vunpack.c.l.b16 %v254
    %v390 = vunpack.c.l.b16 %v255
    %v391 = vunpack.c.l.b16 %v256
    %v392 = vunpack.c.l.b16 %v257
    %v393 = vunpack.c.l.b16 %v258
    %v394 = vunpack.c.l.b16 %v259
    %v395 = vunpack.c.l.b16 %v260
    %v396 = vunpack.c.l.b16 %v261
    %v397 = vunpack.c.l.b16 %v262
    %v398 = vunpack.c.l.b16 %v263
    %v399 = vunpack.c.l.b16 %v264
    %v400 = vunpack.c.l.b16 %v265
    %v401 = vunpack.c.l.b16 %v266
    %v402 = vunpack.c.l.b16 %v267
    %v403 = vunpack.c.l.b16 %v268
    %v404 = vunpack.c.l.b16 %v269
    %v405 = vunpack.c.l.b16 %v270
    %v406 = vunpack.c.l.b16 %v271
    %v407 = vunpack.c.l.b16 %v272
    %v408 = vunpack.c.l.b16 %v273
    %v409 = vunpack.c.l.b16 %v274
    %v410 = vunpack.c.l.b16 %v275
    %v411 = vunpack.c.l.b16 %v276
    %v412 = vunpack.c.l.b16 %v277
    %v413 = vunpack.c.l.b16 %v278
    %v414 = vunpack.c.l.b16 %v279
    %v415 = vunpack.c.l.b16 %v280
    %v416 = vunpack.c.l.b16 %v281
    %v417 = vunpack.c.l.b16 %v282
    %v418 = vunpack.c.l.b16 %v283
    %v419 = vunpack.c.l.b16 %v284
    %v420 = vunpack.c.l.b16 %v285
    %v421 = vunpack.c.l.b16 %v286
    %v422 = vunpack.c.l.b16 %v287
    %v423 = vunpack.c.l.b16 %v288
    %v424 = vunpack.c.l.b16 %v289
    %v425 = vunpack.c.l.b16 %v290
    %v426 = vunpack.c.l.b16 %v291
    %v427 = vunpack.c.l.b16 %v292
    %v428 = vunpack.c.l.b16 %v293
    %v429 = vunpack.c.l.b16 %v294
    %v430 = vunpack.c.l.b16 %v295
    %v431 = vunpack.c.l.b16 %v296
    %v432 = vunpack.c.l.b16 %v297
    %v433 = vunpack.c.l.b16 %v298
    %v434 = vunpack.c.l.b16 %v299
    %v435 = vunpack.c.l.b16 %v300
    %v436 = vunpack.c.l.b16 %v301
    %v437 = vunpack.c.l.b16 %v302
    %v438 = vunpack.c.l.b16 %v303
    %v439 = vunpack.c.l.b16 %v304
    %v440 = vunpack.c.l.b16 %v305
    %v441 = vunpack.c.l.b16 %v306
    %v442 = vunpack.c.l.b16 %v307
    %v443 = vunpack.c.l.b16 %v308
    %v444 = vunpack.c.l.b16 %v309
    %v445 = vunpack.c.l.b16 %v310
    %v446 = vunpack.c.l.b16 %v311
    %v447 = vunpack.c.l.b16 %v312
    %v448 = vunpack.c.l.b16 %v313
    %v449 = vpack.c.b16 %v386, %v385
    %v450 = vpack.c.b16 %v388, %v387
    %v451 = vpack.c.b16 %v390, %v389
    %v452 = vpack.c.b16 %v392, %v391
    %v453 = vpack.c.b16 %v394, %v393
    %v454 = vpack.c.b16 %v396, %v395
    %v455 = vpack.c.b16 %v398, %v397
    %v456 = vpack.c.b16 %v400, %v399
    %v457 = vpack.c.b16 %v402, %v401
    %v458 = vpack.c.b16 %v404, %v403
    %v459 = vpack.c.b16 %v406, %v405
    %v460 = vpack.c.b16 %v408, %v407
    %v461 = vpack.c.b16 %v410, %v409
    %v462 = vpack.c.b16 %v412, %v411
    %v463 = vpack.c.b16 %v414, %v413
    %v464 = vpack.c.b16 %v416, %v415
    %v465 = vpack.c.b16 %v418, %v417
    %v466 = vpack.c.b16 %v420, %v419
    %v467 = vpack.c.b16 %v422, %v421
    %v468 = vpack.c.b16 %v424, %v423
    %v469 = vpack.c.b16 %v426, %v425
    %v470 = vpack.c.b16 %v428, %v427
    %v471 = vpack.c.b16 %v430, %v429
    %v472 = vpack.c.b16 %v432, %v431
    %v473 = vpack.c.b16 %v434, %v433
    %v474 = vpack.c.b16 %v436, %v435
    %v475 = vpack.c.b16 %v438, %v437
    %v476 = vpack.c.b16 %v440, %v439
    %v477 = vpack.c.b16 %v442, %v441
    %v478 = vpack.c.b16 %v444, %v443
    %v479 = vpack.c.b16 %v446, %v445
    %v480 = vpack.c.b16 %v448, %v447
    %513 = vmatprep.subr.bf16.mxu0 0
    %514 = vmatpush1.bf16.msra.mxu0 %v449
    %515 = vmatprep.subr.bf16.mxu0 0
    %516 = vmatpush1.bf16.msra.mxu0 %v450
    %517 = vmatprep.subr.bf16.mxu0 0
    %518 = vmatpush1.bf16.msra.mxu0 %v451
    %519 = vmatprep.subr.bf16.mxu0 0
    %520 = vmatpush1.bf16.msra.mxu0 %v452
    %521 = vmatprep.subr.bf16.mxu0 0
    %522 = vmatpush1.bf16.msra.mxu0 %v453
    %523 = vmatprep.subr.bf16.mxu0 0
    %524 = vmatpush1.bf16.msra.mxu0 %v454
    %525 = vmatprep.subr.bf16.mxu0 0
    %526 = vmatpush1.bf16.msra.mxu0 %v455
    %527 = vmatprep.subr.bf16.mxu0 0
    %528 = vmatpush1.bf16.msra.mxu0 %v456
    %529 = vmatprep.subr.bf16.mxu0 0
    %530 = vmatpush1.bf16.msra.mxu0 %v457
    %531 = vmatprep.subr.bf16.mxu0 0
    %532 = vmatpush1.bf16.msra.mxu0 %v458
    %533 = vmatprep.subr.bf16.mxu0 0
    %534 = vmatpush1.bf16.msra.mxu0 %v459
    %535 = vmatprep.subr.bf16.mxu0 0
    %536 = vmatpush1.bf16.msra.mxu0 %v460
    %537 = vmatprep.subr.bf16.mxu0 0
    %538 = vmatpush1.bf16.msra.mxu0 %v461
    %539 = vmatprep.subr.bf16.mxu0 0
    %540 = vmatpush1.bf16.msra.mxu0 %v462
    %541 = vmatprep.subr.bf16.mxu0 0
    %542 = vmatpush1.bf16.msra.mxu0 %v463
    %543 = vmatprep.subr.bf16.mxu0 0
    %544 = vmatpush1.bf16.msra.mxu0 %v464
    %545 = vmatprep.mubr.bf16.mxu0 %v247
    %546 = vmatmul.mubr.bf16.gmra.mrb[0].mxu0 %v246
    %v547 = vpop.f32.mrb[0].mxu0
    %v548 = vadd.f32 %v319, %v547
    %v549 = vpop.f32.mrb[0].mxu0
    %v550 = vpop.f32.mrb[0].mxu0
    %v551 = vpop.f32.mrb[0].mxu0
    %552 = vdwg.mxu0
    %553 = vmatprep.subr.bf16.mxu0 0
    %554 = vmatpush1.bf16.msra.mxu0 %v465
    %555 = vmatprep.subr.bf16.mxu0 0
    %556 = vmatpush1.bf16.msra.mxu0 %v466
    %557 = vmatprep.subr.bf16.mxu0 0
    %558 = vmatpush1.bf16.msra.mxu0 %v467
    %559 = vmatprep.subr.bf16.mxu0 0
    %560 = vmatpush1.bf16.msra.mxu0 %v468
    %561 = vmatprep.subr.bf16.mxu0 0
    %562 = vmatpush1.bf16.msra.mxu0 %v469
    %563 = vmatprep.subr.bf16.mxu0 0
    %564 = vmatpush1.bf16.msra.mxu0 %v470
    %565 = vmatprep.subr.bf16.mxu0 0
    %566 = vmatpush1.bf16.msra.mxu0 %v471
    %567 = vmatprep.subr.bf16.mxu0 0
    %568 = vmatpush1.bf16.msra.mxu0 %v472
    %569 = vmatprep.subr.bf16.mxu0 0
    %570 = vmatpush1.bf16.msra.mxu0 %v473
    %571 = vmatprep.subr.bf16.mxu0 0
    %572 = vmatpush1.bf16.msra.mxu0 %v474
    %573 = vmatprep.subr.bf16.mxu0 0
    %574 = vmatpush1.bf16.msra.mxu0 %v475
    %575 = vmatprep.subr.bf16.mxu0 0
    %576 = vmatpush1.bf16.msra.mxu0 %v476
    %577 = vmatprep.subr.bf16.mxu0 0
    %578 = vmatpush1.bf16.msra.mxu0 %v477
    %579 = vmatprep.subr.bf16.mxu0 0
    %580 = vmatpush1.bf16.msra.mxu0 %v478
    %581 = vmatprep.subr.bf16.mxu0 0
    %582 = vmatpush1.bf16.msra.mxu0 %v479
    %583 = vmatprep.subr.bf16.mxu0 0
    %584 = vmatpush1.bf16.msra.mxu0 %v480
    %585 = vmatprep.mubr.bf16.mxu0 %v249
    %586 = vmatmul.mubr.bf16.gmra.mrb[0].mxu0 %v248
    %v587 = vpop.f32.mrb[0].mxu0
    %v588 = vadd.f32 %v548, %v587
    %v589 = vpop.f32.mrb[0].mxu0
    %v590 = vpop.f32.mrb[0].mxu0
    %v591 = vpop.f32.mrb[0].mxu0
    %592 = vdwg.mxu0
    %v593 = vmax.f32 %v588, 0.0
    %594 = vst [vmem:[#allocation11] sm:$0x3] %v593
    %v595 = vpack.c.bf16 %v593, %v593
    %v596 = vld [vmem:[#allocation8] sm:$0xf]
    %v597 = vld [vmem:[#allocation8 + $0x4] sm:$0xf]
    %v598 = vld [vmem:[#allocation8 + $0x8] sm:$0xf]
    %v599 = vld [vmem:[#allocation8 + $0xc] sm:$0xf]
    %v600 = vld [vmem:[#allocation8 + $0x10] sm:$0xf]
    %v601 = vld [vmem:[#allocation8 + $0x14] sm:$0xf]
    %v602 = vld [vmem:[#allocation8 + $0x18] sm:$0xf]
    %v603 = vld [vmem:[#allocation8 + $0x1c] sm:$0xf]
    %v604 = vld [vmem:[#allocation8 + $0x20] sm:$0xf]
    %v605 = vld [vmem:[#allocation8 + $0x24] sm:$0xf]
    %v606 = vld [vmem:[#allocation8 + $0x28] sm:$0xf]
    %v607 = vld [vmem:[#allocation8 + $0x2c] sm:$0xf]
    %v608 = vld [vmem:[#allocation8 + $0x30] sm:$0xf]
    %v609 = vld [vmem:[#allocation8 + $0x34] sm:$0xf]
    %v610 = vld [vmem:[#allocation8 + $0x38] sm:$0xf]
    %v611 = vld [vmem:[#allocation8 + $0x3c] sm:$0xf]
    %v612 = vld [vmem:[%s6] sm:$0x1]
    %v614 = vlaneseq
    %v615 = vshrl.u32 %v614, 7
    %v616 = vsub.s32 0, %v615
    %v617 = vrot.slane %v612, %v616
    %v635 = vunpack.c.l.b16 %v596
    %v636 = vunpack.c.l.b16 %v597
    %v637 = vunpack.c.l.b16 %v598
    %v638 = vunpack.c.l.b16 %v599
    %v639 = vunpack.c.l.b16 %v600
    %v640 = vunpack.c.l.b16 %v601
    %v641 = vunpack.c.l.b16 %v602
    %v642 = vunpack.c.l.b16 %v603
    %v643 = vunpack.c.l.b16 %v604
    %v644 = vunpack.c.l.b16 %v605
    %v645 = vunpack.c.l.b16 %v606
    %v646 = vunpack.c.l.b16 %v607
    %v647 = vunpack.c.l.b16 %v608
    %v648 = vunpack.c.l.b16 %v609
    %v649 = vunpack.c.l.b16 %v610
    %v650 = vunpack.c.l.b16 %v611
    %v651 = vpack.c.b16 %v636, %v635
    %v652 = vpack.c.b16 %v638, %v637
    %v653 = vpack.c.b16 %v640, %v639
    %v654 = vpack.c.b16 %v642, %v641
    %v655 = vpack.c.b16 %v644, %v643
    %v656 = vpack.c.b16 %v646, %v645
    %v657 = vpack.c.b16 %v648, %v647
    %v658 = vpack.c.b16 %v650, %v649
    %667 = vmatprep.subr.bf16.mxu0 0
    %668 = vmatpush1.bf16.msra.mxu0 %v651
    %669 = vmatprep.subr.bf16.mxu0 0
    %670 = vmatpush1.bf16.msra.mxu0 %v652
    %671 = vmatprep.subr.bf16.mxu0 0
    %672 = vmatpush1.bf16.msra.mxu0 %v653
    %673 = vmatprep.subr.bf16.mxu0 0
    %674 = vmatpush1.bf16.msra.mxu0 %v654
    %675 = vmatprep.subr.bf16.mxu0 0
    %676 = vmatpush1.bf16.msra.mxu0 %v655
    %677 = vmatprep.subr.bf16.mxu0 0
    %678 = vmatpush1.bf16.msra.mxu0 %v656
    %679 = vmatprep.subr.bf16.mxu0 0
    %680 = vmatpush1.bf16.msra.mxu0 %v657
    %681 = vmatprep.subr.bf16.mxu0 0
    %682 = vmatpush1.bf16.msra.mxu0 %v658
    %683 = vmatprep.subr.bf16.mxu0 0
    %684 = vmatpush1.bf16.msra.mxu0 0
    %685 = vmatprep.subr.bf16.mxu0 0
    %686 = vmatpush1.bf16.msra.mxu0 0
    %687 = vmatprep.subr.bf16.mxu0 0
    %688 = vmatpush1.bf16.msra.mxu0 0
    %689 = vmatprep.subr.bf16.mxu0 0
    %690 = vmatpush1.bf16.msra.mxu0 0
    %691 = vmatprep.subr.bf16.mxu0 0
    %692 = vmatpush1.bf16.msra.mxu0 0
    %693 = vmatprep.subr.bf16.mxu0 0
    %694 = vmatpush1.bf16.msra.mxu0 0
    %695 = vmatprep.subr.bf16.mxu0 0
    %696 = vmatpush1.bf16.msra.mxu0 0
    %697 = vmatprep.subr.bf16.mxu0 0
    %698 = vmatpush1.bf16.msra.mxu0 0
    %699 = vmatprep.mubr.bf16.mxu0 0
    %700 = vmatmul.mubr.bf16.gmra.mrb[0].mxu0 %v595
    %v701 = vpop.f32.mrb[0].mxu0
    %v702 = vadd.f32 %v617, %v701
    %v703 = vpop.f32.mrb[0].mxu0
    %v704 = vpop.f32.mrb[0].mxu0
    %v705 = vpop.f32.mrb[0].mxu0
    %706 = vdwg.mxu0
    %v707 = vtanh.pop %v702
    %708 = vst [vmem:[#allocation10] sm:$0x3] %v707
    // Predicated region
    $region46: #{actor_forward.1} parent=1 // pred_check
      _
    $region47: #{actor_forward.1} parent=1 // pred_check_branch
      %710 = sbr.rel (0) target = $region49
    $region48: #{actor_forward.1} parent=1 // pred_region
      %s712 = ssub.s32 32, 32
      %713 = vsyncadd [#allocation4], %s712
      %s715 = sshll.u32 [#allocation10], 4
      %s716 = int_to_ptr.vmem [resolvable:$true] %s715
      %718 = dma.vmem_to_hbm [thread:$0]  %s716, 32, %s7, [#allocation4]
    $region49: #{actor_forward.1} parent=1 // pred_fallthru
      _
    // Predicated region
    $region50: #{actor_forward.1} parent=1 // pred_check
      _
    $region51: #{actor_forward.1} parent=1 // pred_check_branch
      %720 = sbr.rel (0) target = $region53
    $region52: #{actor_forward.1} parent=1 // pred_region
      %s722 = ssub.s32 32, 32
      %723 = vsyncadd [#allocation12], %s722
      %s725 = sshll.u32 [#allocation11], 4
      %s726 = int_to_ptr.vmem [resolvable:$true] %s725
      %728 = dma.vmem_to_hbm [thread:$0]  %s726, 32, %s8, [#allocation12]
    $region53: #{actor_forward.1} parent=1 // pred_fallthru
      _
    // Predicated region
    $region54: #{actor_forward.1} parent=1 // pred_check
      _
    $region55: #{actor_forward.1} parent=1 // pred_check_branch
      %730 = sbr.rel (0) target = $region57
    $region56: #{actor_forward.1} parent=1 // pred_region
      %731 = dma.done [#allocation4], 32
    $region57: #{actor_forward.1} parent=1 // pred_fallthru
      _
    // Predicated region
    $region58: #{actor_forward.1} parent=1 // pred_check
      _
    $region59: #{actor_forward.1} parent=1 // pred_check_branch
      %733 = sbr.rel (0) target = $region61
    $region60: #{actor_forward.1} parent=1 // pred_region
      %734 = dma.done [#allocation12], 32
    $region61: #{actor_forward.1} parent=1 // pred_fallthru
      _
    %735 = vsyncpa [#allocation3], 1
    %736 = vsyncpa [#allocation6], 1
    %737 = vsyncpa [#allocation9], 1
    %738 = vsyncpa [#allocation4], 1
    %739 = vsyncpa [#allocation12], 1

</llo_original>
